<compile_context>
chip_gen: v7x
topology: tpu7x:2x2x1
jax: 0.10.0
libtpu: 0.0.40
codegen_flags: <defaults>
</compile_context>

<pallas_src>
import functools
import math

import jax
import jax.numpy as jnp
from jax import lax
from jax.experimental import pallas as pl
from jax.experimental.pallas import tpu as pltpu


# -----------------------------------------------------------------------------
# Kernel 1: fused QKV projection (+ positional encoding, + 1/sqrt(C) folded
# into q, + k emitted pre-transposed).  Computed exactly once per token.
# -----------------------------------------------------------------------------
def _qkv_projection_kernel(x_ref, w_qkv_ref, q_ref, kt_ref, v_ref, *,
                           head_size, n_embd, t_tile, compute_dtype):
    H = head_size
    cdt = compute_dtype
    ti = pl.program_id(1)

    x = x_ref[0]                                              # (tt, C) f32
    # Single fused MXU matmul; weights are pre-transposed wrapper-side.
    qkv = jnp.dot(x.astype(cdt), w_qkv_ref[...].astype(cdt),
                  preferred_element_type=jnp.float32)         # (tt, 3H) f32

    # pos_enc = arange(time)[None, :, None]; use GLOBAL timestep indices so
    # results stay correct under sequence tiling.  Kept in f32 always.
    pos = (lax.broadcasted_iota(jnp.int32, (t_tile, H), 0)
           + ti * t_tile).astype(jnp.float32)
    inv_scale = jnp.float32(1.0 / math.sqrt(float(n_embd)))

    q = (qkv[:, 0 * H:1 * H] + pos) * inv_scale               # scale folded into q
    k = qkv[:, 1 * H:2 * H] + pos
    v = qkv[:, 2 * H:3 * H]

    q_ref[0] = q
    kt_ref[0] = k.T        # k^T materialized once (no per-q-tile XLU transpose)
    v_ref[0] = v


# -----------------------------------------------------------------------------
# Kernel 2: attention.  grid = (B, num_q_tiles); q is tiled, k^T / v block
# indices are constant across qi so they are fetched once per batch element.
# -----------------------------------------------------------------------------
def _attention_kernel(q_ref, kt_ref, v_ref, out_ref, attn_ref, *,
                      q_tile, decoder, compute_dtype):
    cdt = compute_dtype
    q_start = pl.program_id(1) * q_tile

    q = q_ref[0]                                              # (tq, H) f32, scaled
    kt = kt_ref[0]                                            # (H, T)  f32, +pos
    v = v_ref[0]                                              # (T, H)  f32

    # Scores stay f32: q/k already carry the additive positional term
    # (magnitude up to T-1) which bf16 would round visibly for long T.
    s = jnp.dot(q, kt, preferred_element_type=jnp.float32)    # (tq, T)

    if decoder:
        # Causal mask; large finite negative avoids -inf - m = NaN edge cases.
        row = lax.broadcasted_iota(jnp.int32, s.shape, 0) + q_start
        col = lax.broadcasted_iota(jnp.int32, s.shape, 1)
        s = jnp.where(col <= row, s, jnp.float32(-1e30))
    # TODO(synk): for decoder=True the key extent per q tile could be bounded
    # to q_start + q_tile (skip fully-masked K blocks via an inner fori_loop);
    # left out since the O(B*T^2) attn writeback dominates at large T.

    m = jnp.max(s, axis=-1, keepdims=True)
    p = jnp.exp(s - m)
    denom = jnp.sum(p, axis=-1, keepdims=True)
    # Exact reciprocal (denom is only (tq,1) so this is ~free) so the emitted
    # attention rows sum to 1 to f32 accuracy.
    probs = p * pl.reciprocal(denom, approx=False)

    attn_ref[0] = probs.astype(attn_ref.dtype)
    # TODO(synk): nn.Dropout(0.2) is stochastic/training-only; identity (eval).
    out_ref[0] = jnp.dot(probs.astype(cdt), v.astype(cdt),
                         preferred_element_type=jnp.float32).astype(out_ref.dtype)


# -----------------------------------------------------------------------------
# VMEM sizing helpers.
# -----------------------------------------------------------------------------
def _vmem_capacity_bytes():
    """Physical VMEM of this TPU generation, with a per-generation fallback."""
    try:
        return int(pltpu.get_tpu_info().vmem_capacity_bytes)
    except Exception:
        pass
    try:
        kind = jax.devices()[0].device_kind.lower()
    except Exception:
        kind = ""
    if "v4" in kind or "v5" in kind or "v6" in kind:
        return 128 * 1024 * 1024          # v4/v5e/v6e: 128 MiB per core
    return 64 * 1024 * 1024               # conservative (v7x: 64 MiB per TC)


def _proj_vmem_estimate(tt, C, H):
    f32 = 4
    blocks = 2 * (tt * C + C * 3 * H + 3 * tt * H) * f32      # double-buffered
    temps = 2 * tt * 3 * H * f32
    return blocks + temps


def _attn_vmem_estimate(T, H, tq):
    f32 = 4
    blocks = 2 * (2 * tq * H + tq * T + 2 * T * H) * f32       # double-buffered
    temps = 3 * tq * T * f32                                   # scores / p / probs
    return blocks + temps


def _vmem_limit(cap, est):
    # Leave headroom for compiler-internal scratch/semaphores: cap at ~72%.
    return int(min(int(cap * 0.72), max(4 * est, 32 * 1024 * 1024)))


def _choose_t_tile(T, C, H, budget):
    # kt output block last dim is t_tile -> must be a multiple of 128 or == T.
    for tt in (2048, 1024, 512, 256, 128):
        if tt <= T and T % tt == 0 and _proj_vmem_estimate(tt, C, H) <= budget:
            return tt
    return T


def _choose_q_tile(T, H, budget):
    for tq in (1024, 512, 256, 128, 64, 32, 16, 8):
        if tq <= T and T % tq == 0 and _attn_vmem_estimate(T, H, tq) <= budget:
            return tq
    for tq in (8, 16, 32, 64, 128):                            # smallest legal
        if tq <= T and T % tq == 0:
            return tq
    return T


# -----------------------------------------------------------------------------
# Wrapper.
# -----------------------------------------------------------------------------
def attention_head_forward(x, wq, wk, wv, *, decoder=False,
                           compute_dtype=jnp.float32,
                           attn_dtype=jnp.float32):
    """Pallas implementation of AttentionHead.forward (alibi=False path)."""
    B, T, C = x.shape
    H = wq.shape[0]

    # Fuse + pre-transpose the three projection weights once (wrapper-side).
    w_qkv = jnp.concatenate([wq, wk, wv], axis=0).T.astype(jnp.float32)  # (C, 3H)

    vmem_cap = _vmem_capacity_bytes()
    budget = vmem_cap // 3

    # --- Pass 1: QKV projection (+pos, +scale, k transposed), once per token.
    t_tile = _choose_t_tile(T, C, H, budget)
    num_t_tiles = T // t_tile

    proj_kernel = functools.partial(
        _qkv_projection_kernel, head_size=H, n_embd=C, t_tile=t_tile,
        compute_dtype=compute_dtype)
    proj_cost = pl.CostEstimate(
        flops=int(2 * B * T * C * 3 * H), transcendentals=0,
        bytes_accessed=int(4 * (B * T * C + C * 3 * H + 3 * B * T * H)))

    q_s, k_t, v_p = pl.pallas_call(
        proj_kernel,
        out_shape=(
            jax.ShapeDtypeStruct((B, T, H), jnp.float32),   # q (scaled, +pos)
            jax.ShapeDtypeStruct((B, H, T), jnp.float32),   # k^T (+pos)
            jax.ShapeDtypeStruct((B, T, H), jnp.float32),   # v
        ),
        grid_spec=pltpu.PrefetchScalarGridSpec(
            num_scalar_prefetch=0,
            grid=(B, num_t_tiles),
            in_specs=[
                pl.BlockSpec((1, t_tile, C), lambda b, ti: (b, ti, 0)),
                pl.BlockSpec((C, 3 * H), lambda b, ti: (0, 0)),
            ],
            out_specs=[
                pl.BlockSpec((1, t_tile, H), lambda b, ti: (b, ti, 0)),
                pl.BlockSpec((1, H, t_tile), lambda b, ti: (b, 0, ti)),
                pl.BlockSpec((1, t_tile, H), lambda b, ti: (b, ti, 0)),
            ],
        ),
        compiler_params=pltpu.CompilerParams(
            dimension_semantics=("parallel", "parallel"),
            vmem_limit_bytes=_vmem_limit(vmem_cap, _proj_vmem_estimate(t_tile, C, H)),
        ),
        cost_estimate=proj_cost,
    )(x.astype(jnp.float32), w_qkv)

    # --- Pass 2: attention over query tiles.
    q_tile = _choose_q_tile(T, H, budget)
    num_q_tiles = T // q_tile

    attn_kernel = functools.partial(
        _attention_kernel, q_tile=q_tile, decoder=decoder,
        compute_dtype=compute_dtype)
    attn_cost = pl.CostEstimate(
        flops=int(4 * B * T * T * H),
        transcendentals=int(B * T * T),
        bytes_accessed=int(4 * (4 * B * T * H + B * T * T)))

    # NOTE / TODO(synk): packing several heads per call (stacking weights so
    # the output/value lane dim reaches 128) would remove the masked vst on
    # the (.., H) outputs and fill the MXU, but changes the single-head API.
    res, attn = pl.pallas_call(
        attn_kernel,
        out_shape=(
            jax.ShapeDtypeStruct((B, T, H), jnp.float32),
            jax.ShapeDtypeStruct((B, T, T), attn_dtype),
        ),
        grid_spec=pltpu.PrefetchScalarGridSpec(
            num_scalar_prefetch=0,
            grid=(B, num_q_tiles),
            in_specs=[
                pl.BlockSpec((1, q_tile, H), lambda b, qi: (b, qi, 0)),  # q tile
                pl.BlockSpec((1, H, T), lambda b, qi: (b, 0, 0)),        # k^T once/b
                pl.BlockSpec((1, T, H), lambda b, qi: (b, 0, 0)),        # v   once/b
            ],
            out_specs=[
                pl.BlockSpec((1, q_tile, H), lambda b, qi: (b, qi, 0)),  # res tile
                pl.BlockSpec((1, q_tile, T), lambda b, qi: (b, qi, 0)),  # attn rows
            ],
        ),
        compiler_params=pltpu.CompilerParams(
            dimension_semantics=("parallel", "parallel"),
            vmem_limit_bytes=_vmem_limit(vmem_cap, _attn_vmem_estimate(T, H, q_tile)),
        ),
        cost_estimate=attn_cost,
    )(q_s, k_t, v_p)
    return res, attn


# -----------------------------------------------------------------------------
# Pure-JAX reference mirroring the PyTorch forward (alibi=False, eval mode).
# With compute_dtype=f32 this is exactly the module math; with bf16 it mirrors
# the kernel's mixed-precision policy (bf16 projection / P@V, f32 scores).
# -----------------------------------------------------------------------------
def _reference_forward(x, wq, wk, wv, *, decoder=False,
                       compute_dtype=jnp.float32):
    B, T, C = x.shape
    cdt = compute_dtype
    xc = x.astype(cdt)
    q = jnp.einsum("btc,hc->bth", xc, wq.astype(cdt),
                   preferred_element_type=jnp.float32)
    k = jnp.einsum("btc,hc->bth", xc, wk.astype(cdt),
                   preferred_element_type=jnp.float32)
    v = jnp.einsum("btc,hc->bth", xc, wv.astype(cdt),
                   preferred_element_type=jnp.float32)
    pos = jnp.arange(T, dtype=jnp.float32)[None, :, None]
    q = (q + pos) * (1.0 / math.sqrt(float(C)))
    k = k + pos
    s = jnp.einsum("bth,bsh->bts", q, k, preferred_element_type=jnp.float32)
    if decoder:
        mask = jnp.tril(jnp.ones((T, T), dtype=bool))
        s = jnp.where(mask, s, -jnp.inf)
    p = jax.nn.softmax(s, axis=-1)
    res = jnp.einsum("bts,bsh->bth", p.astype(cdt), v.astype(cdt),
                     preferred_element_type=jnp.float32)
    return res, p


if __name__ == "__main__":
    # Small, module-consistent shapes.
    batch, block_size, n_embd, head_size = 2, 8, 32, 16

    key = jax.random.PRNGKey(0)
    kx, kq, kk, kv = jax.random.split(key, 4)

    x = jax.random.normal(kx, (batch, block_size, n_embd), dtype=jnp.float32)
    bound = 1.0 / math.sqrt(n_embd)
    wq = jax.random.uniform(kq, (head_size, n_embd), jnp.float32, -bound, bound)
    wk = jax.random.uniform(kk, (head_size, n_embd), jnp.float32, -bound, bound)
    wv = jax.random.uniform(kv, (head_size, n_embd), jnp.float32, -bound, bound)

    for decoder in (False, True):
        for cdt in (jnp.float32, jnp.bfloat16):
            res, attn = attention_head_forward(x, wq, wk, wv, decoder=decoder,
                                               compute_dtype=cdt)
            jax.block_until_ready((res, attn))
            res_ref, attn_ref = _reference_forward(x, wq, wk, wv, decoder=decoder,
                                                   compute_dtype=cdt)
            assert jnp.allclose(res, res_ref, atol=5e-3, rtol=5e-3), (decoder, cdt)
            assert jnp.allclose(attn, attn_ref, atol=5e-3, rtol=5e-3), (decoder, cdt)

    # Optional bf16 attention-map writeback (halves the O(B*T^2) HBM traffic).
    res, attn = attention_head_forward(x, wq, wk, wv, decoder=True,
                                       attn_dtype=jnp.bfloat16)
    jax.block_until_ready((res, attn))
    res_ref, attn_ref = _reference_forward(x, wq, wk, wv, decoder=True)
    assert jnp.allclose(res, res_ref, atol=5e-3, rtol=5e-3)
    assert jnp.allclose(attn.astype(jnp.float32), attn_ref, atol=1e-2, rtol=1e-2)

    print("KERNEL_OK")
</pallas_src>

<mosaic_0001>
module attributes {stable_mosaic.version = 11 : i64} {
  func.func @_qkv_projection_kernel(%arg0: i32, %arg1: i32, %arg2: memref<1x8x32xf32, #tpu.memory_space<vmem>>, %arg3: memref<32x48xf32, #tpu.memory_space<vmem>>, %arg4: memref<1x8x16xf32, #tpu.memory_space<vmem>>, %arg5: memref<1x16x8xf32, #tpu.memory_space<vmem>>, %arg6: memref<1x8x16xf32, #tpu.memory_space<vmem>>) attributes {dimension_semantics = [#tpu.dimension_semantics<parallel>, #tpu.dimension_semantics<parallel>], iteration_bounds = array<i64: 2, 1>, scalar_prefetch = 0 : i64, scratch_operands = 0 : i64, tpu.core_type = #tpu.core_type<tc>, window_params = [{transform_indices = @transform_0, window_bounds = array<i64: 1, 8, 32>}, {pipeline_mode = #tpu.pipeline_mode<synchronous>, transform_indices = @transform_1, window_bounds = array<i64: 32, 48>}, {transform_indices = @transform_2, window_bounds = array<i64: 1, 8, 16>}, {transform_indices = @transform_3, window_bounds = array<i64: 1, 16, 8>}, {transform_indices = @transform_4, window_bounds = array<i64: 1, 8, 16>}]} {
    %c0 = arith.constant 0 : index
    %c0_0 = arith.constant 0 : index
    %c0_1 = arith.constant 0 : index
    %0 = vector.load %arg2[%c0, %c0_0, %c0_1] : memref<1x8x32xf32, #tpu.memory_space<vmem>>, vector<1x8x32xf32>
    %1 = vector.shape_cast %0 : vector<1x8x32xf32> to vector<8x32xf32>
    %c0_2 = arith.constant 0 : index
    %c0_3 = arith.constant 0 : index
    %2 = vector.load %arg3[%c0_2, %c0_3] : memref<32x48xf32, #tpu.memory_space<vmem>>, vector<32x48xf32>
    %cst = arith.constant dense<0.000000e+00> : vector<8x48xf32>
    %3 = tpu.matmul %1, %2, %cst {dimension_numbers = #tpu.dot_dimension_numbers<[1], [0], [0], [1], [0, 0, 1, 1], [], []>} : vector<8x32xf32>, vector<32x48xf32>, vector<8x48xf32> -> vector<8x48xf32>
    %4 = tpu.iota {dimensions = array<i32: 0>} : vector<8x16xi32>
    %c8_i32 = arith.constant 8 : i32
    %5 = arith.muli %arg1, %c8_i32 : i32
    %6 = vector.broadcast %5 : i32 to vector<8x16xi32>
    %7 = arith.addi %4, %6 : vector<8x16xi32>
    %8 = arith.sitofp %7 : vector<8x16xi32> to vector<8x16xf32>
    %9 = vector.extract_strided_slice %3 {offsets = [0, 0], sizes = [8, 16], strides = [1, 1]} : vector<8x48xf32> to vector<8x16xf32>
    %10 = arith.addf %9, %8 : vector<8x16xf32>
    %cst_4 = arith.constant 0.176776692 : f32
    %11 = vector.broadcast %cst_4 : f32 to vector<8x16xf32>
    %12 = arith.mulf %10, %11 : vector<8x16xf32>
    %13 = vector.extract_strided_slice %3 {offsets = [0, 16], sizes = [8, 16], strides = [1, 1]} : vector<8x48xf32> to vector<8x16xf32>
    %14 = arith.addf %13, %8 : vector<8x16xf32>
    %15 = vector.extract_strided_slice %3 {offsets = [0, 32], sizes = [8, 16], strides = [1, 1]} : vector<8x48xf32> to vector<8x16xf32>
    %c0_5 = arith.constant 0 : index
    %c0_6 = arith.constant 0 : index
    %c0_7 = arith.constant 0 : index
    %16 = vector.load %arg4[%c0_5, %c0_6, %c0_7] : memref<1x8x16xf32, #tpu.memory_space<vmem>>, vector<1x8x16xf32>
    %17 = vector.shape_cast %16 : vector<1x8x16xf32> to vector<8x16xf32>
    %18 = vector.shape_cast %12 : vector<8x16xf32> to vector<1x8x16xf32>
    tpu.vector_store %arg4[%c0_5, %c0_6, %c0_7], %18 {strides = array<i32>} : memref<1x8x16xf32, #tpu.memory_space<vmem>>, vector<1x8x16xf32>,
    %19 = tpu.transpose %14, [1, 0] : vector<8x16xf32> -> vector<16x8xf32>
    %c0_8 = arith.constant 0 : index
    %c0_9 = arith.constant 0 : index
    %c0_10 = arith.constant 0 : index
    %20 = vector.load %arg5[%c0_8, %c0_9, %c0_10] : memref<1x16x8xf32, #tpu.memory_space<vmem>>, vector<1x16x8xf32>
    %21 = vector.shape_cast %20 : vector<1x16x8xf32> to vector<16x8xf32>
    %22 = vector.shape_cast %19 : vector<16x8xf32> to vector<1x16x8xf32>
    tpu.vector_store %arg5[%c0_8, %c0_9, %c0_10], %22 {strides = array<i32>} : memref<1x16x8xf32, #tpu.memory_space<vmem>>, vector<1x16x8xf32>,
    %c0_11 = arith.constant 0 : index
    %c0_12 = arith.constant 0 : index
    %c0_13 = arith.constant 0 : index
    %23 = vector.load %arg6[%c0_11, %c0_12, %c0_13] : memref<1x8x16xf32, #tpu.memory_space<vmem>>, vector<1x8x16xf32>
    %24 = vector.shape_cast %23 : vector<1x8x16xf32> to vector<8x16xf32>
    %25 = vector.shape_cast %15 : vector<8x16xf32> to vector<1x8x16xf32>
    tpu.vector_store %arg6[%c0_11, %c0_12, %c0_13], %25 {strides = array<i32>} : memref<1x8x16xf32, #tpu.memory_space<vmem>>, vector<1x8x16xf32>,
    return
  }
  func.func @transform_0(%arg0: i32, %arg1: i32) -> (i32, i32, i32) {
    %c0_i32 = arith.constant 0 : i32
    %c0_i32_0 = arith.constant 0 : i32
    return %arg0, %arg1, %c0_i32 : i32, i32, i32
  }
  func.func @transform_1(%arg0: i32, %arg1: i32) -> (i32, i32) {
    %c0_i32 = arith.constant 0 : i32
    %c0_i32_0 = arith.constant 0 : i32
    %c0_i32_1 = arith.constant 0 : i32
    return %c0_i32, %c0_i32_0 : i32, i32
  }
  func.func @transform_2(%arg0: i32, %arg1: i32) -> (i32, i32, i32) {
    %c0_i32 = arith.constant 0 : i32
    %c0_i32_0 = arith.constant 0 : i32
    return %arg0, %arg1, %c0_i32 : i32, i32, i32
  }
  func.func @transform_3(%arg0: i32, %arg1: i32) -> (i32, i32, i32) {
    %c0_i32 = arith.constant 0 : i32
    %c0_i32_0 = arith.constant 0 : i32
    return %arg0, %c0_i32, %arg1 : i32, i32, i32
  }
  func.func @transform_4(%arg0: i32, %arg1: i32) -> (i32, i32, i32) {
    %c0_i32 = arith.constant 0 : i32
    %c0_i32_0 = arith.constant 0 : i32
    return %arg0, %arg1, %c0_i32 : i32, i32, i32
  }
}

</mosaic_0001>

<llo_original>
// kernel: tpu_custom_call.1
$region0: #{tpu_custom_call.1}
  #allocation0 [shape = 'u32[]', space=smem, size = 0x4, offset = 0x4, fixed_abs, tag = 'smem constant byte address 0x4 - core index']
  #allocation1 [shape = 'u32[144,128]{1,0:T(1,128)}', space=vmem, size = 0x12000, scoped, tag = 'internal scratch']
  %s0 = inlined_call_operand.hbm [shape: f32[2,8,32], index: 0, kind: input, shape index: {}]
  %s1 = inlined_call_operand.hbm [shape: f32[32,48], index: 1, kind: input, shape index: {}]
  %s2 = inlined_call_operand.hbm [shape: f32[2,8,16], index: 2, kind: output, shape index: {0}]
  %s3 = inlined_call_operand.vmem [shape: f32[2,16,8], index: 3, kind: output, shape index: {1}]
  %s4 = inlined_call_operand.hbm [shape: f32[2,8,16], index: 4, kind: output, shape index: {2}]
  %5 = xla_tuple %s2, %s3, %s4
  %s6 = sld [smem:[#allocation0]]
  $region65: #{tpu_custom_call.1} parent=0
    _
  %s8 = ssub.s32 1, %s6
  %s9 = scalar_select 0, %s8, %s6
  $region1: #{tpu_custom_call.1} parent=0
    #allocation2 [shape = 'u8[8192]{0}', space=vmem, size = 0x2000, scoped, tag = 'input window, operand 0']
    #allocation3 [shape = 's32[2]{0}', space=sflag, size = 0x8, scoped, tag = 'scoped memory for tpu_custom_call.1']
    #allocation4 [shape = 's32[2]{0}', space=sflag, size = 0x8, scoped, tag = 'scoped memory for tpu_custom_call.1']
    #allocation5 [shape = 'u8[16384]{0}', space=vmem, size = 0x4000, scoped, tag = 'input window, operand 1, single buffered']
    #allocation6 [shape = 's32[1]{0}', space=sflag, size = 0x4, scoped, tag = 'scoped memory for tpu_custom_call.1']
    #allocation7 [shape = 'u8[8192]{0}', space=vmem, size = 0x2000, scoped, tag = 'output window, operand 0']
    #allocation8 [shape = 'u8[8192]{0}', space=vmem, size = 0x2000, scoped, tag = 'output window, operand 2']
    #allocation9 [shape = 's32[2]{0}', space=sflag, size = 0x8, scoped, tag = 'scoped memory for tpu_custom_call.1']
    %10 = vsyncpa [#allocation3], 0
    %s11 = scalar_lea.sflag [#allocation3], 1
    %12 = vsyncpa %s11, 0
    %13 = vsyncpa [#allocation6], 0
    %14 = vsyncpa [#allocation4], 0
    %s15 = scalar_lea.sflag [#allocation4], 1
    %16 = vsyncpa %s15, 0
    %17 = vsyncpa [#allocation9], 0
    %s18 = scalar_lea.sflag [#allocation9], 1
    %19 = vsyncpa %s18, 0
    loop: start=0, step=1, limit=4
    $region2: #{tpu_custom_call.1} parent=1 // loop_pre_header
      _
    $region3: #{tpu_custom_call.1} parent=1 // loop_header
      %s21 = sphi 0, %s25
      %p22 = scmp.ge.s32.totalorder %s21, 4
      %s28 = sphi 0, %s40
      %s29 = sphi 0, %s36
      %s30 = sphi 0, %s28
      %s31 = sphi 0, %s29
      %s32 = sphi 0, %s30
      %s33 = sphi 0, %s31
      %s45 = sphi 0, %s47
      %s48 = sphi 0, %s45
      %s49 = sphi 0, %s48
      %s65 = sphi 0, %s49
      %s69 = sphi 0, %s69
      %s71 = sphi 0, %s69
      %s72 = sphi 0, %s71
      %s86 = sphi 0, %s72
      %s94 = sphi 0, %s96
      %s97 = sphi 0, %s94
      %s98 = sphi 0, %s97
      %s114 = sphi 0, %s98
      %s122 = sphi 0, %s124
      %s125 = sphi 0, %s122
      %s126 = sphi 0, %s125
      %s142 = sphi 0, %s126
      %s150 = sphi 0, %s152
      %s153 = sphi 0, %s150
      %s154 = sphi 0, %s153
      %s170 = sphi 0, %s154
    $region4: #{tpu_custom_call.1} parent=1 // loop_header_branch
      %24 = sbr.rel (%p22) target = $region8
    $region5: #{tpu_custom_call.1} parent=1 // loop_body
      %s26 = ssub.s32 %s21, 1
      %s27 = ssub.s32 %s21, 2
      %s34 = sadd.s32 1, %s29
      %p35 = scmp.ge.s32.totalorder %s34, 1
      %s36 = scalar_select %p35, 0, %s34
      %s37 = sadd.s32 1, %s28
      %s38 = scalar_select %p35, %s37, %s28
      %p39 = scmp.ge.s32.totalorder %s38, 2
      %s40 = scalar_select %p39, 0, %s38
      %s41 = ssub.s32 %s28, %s40
      %s42 = ssub.s32 %s29, %s36
      %s43 = sor.u32 %s41, %s42
      %p44 = scmp.eq.s32.totalorder %s43, 0
      %s46 = sadd.s32 %s45, 1
      %s47 = scalar_select %p44, %s45, %s46
      %p50 = pneg %p44
      %p51 = scmp.eq.s32.totalorder %s21, 1
      %p52 = por %p50, %p51
      %p53 = scmp.ne.s32.totalorder %s45, %s48
      %p54 = scmp.eq.s32.totalorder %s21, 0
      %p55 = por %p53, %p54
      %p56 = scmp.ne.s32.totalorder %s45, %s48
      %p57 = scmp.eq.s32.totalorder %s26, 1
      %p58 = por %p56, %p57
      %p59 = scmp.ne.s32.totalorder %s48, %s49
      %p60 = scmp.eq.s32.totalorder %s26, 0
      %p61 = por %p59, %p60
      %p62 = scmp.ne.s32.totalorder %s48, %s49
      %p63 = scmp.eq.s32.totalorder %s27, 1
      %p64 = por %p62, %p63
      %p66 = scmp.ne.s32.totalorder %s49, %s65
      %p67 = scmp.eq.s32.totalorder %s27, 0
      %p68 = por %p66, %p67
      %s70 = sadd.s32 %s69, 1
      %p73 = scmp.eq.s32.totalorder %s21, 1
      %p74 = scmp.ne.s32.totalorder %s69, %s71
      %p75 = scmp.eq.s32.totalorder %s21, 0
      %p76 = por %p74, %p75
      %p77 = scmp.ne.s32.totalorder %s69, %s71
      %p78 = scmp.eq.s32.totalorder %s26, 1
      %p79 = por %p77, %p78
      %p80 = scmp.ne.s32.totalorder %s71, %s72
      %p81 = scmp.eq.s32.totalorder %s26, 0
      %p82 = por %p80, %p81
      %p83 = scmp.ne.s32.totalorder %s71, %s72
      %p84 = scmp.eq.s32.totalorder %s27, 1
      %p85 = por %p83, %p84
      %p87 = scmp.ne.s32.totalorder %s72, %s86
      %p88 = scmp.eq.s32.totalorder %s27, 0
      %p89 = por %p87, %p88
      %s90 = ssub.s32 %s28, %s40
      %s91 = ssub.s32 %s29, %s36
      %s92 = sor.u32 %s90, %s91
      %p93 = scmp.eq.s32.totalorder %s92, 0
      %s95 = sadd.s32 %s94, 1
      %s96 = scalar_select %p93, %s94, %s95
      %p99 = pneg %p93
      %p100 = scmp.eq.s32.totalorder %s21, 1
      %p101 = por %p99, %p100
      %p102 = scmp.ne.s32.totalorder %s94, %s97
      %p103 = scmp.eq.s32.totalorder %s21, 0
      %p104 = por %p102, %p103
      %p105 = scmp.ne.s32.totalorder %s94, %s97
      %p106 = scmp.eq.s32.totalorder %s26, 1
      %p107 = por %p105, %p106
      %p108 = scmp.ne.s32.totalorder %s97, %s98
      %p109 = scmp.eq.s32.totalorder %s26, 0
      %p110 = por %p108, %p109
      %p111 = scmp.ne.s32.totalorder %s97, %s98
      %p112 = scmp.eq.s32.totalorder %s27, 1
      %p113 = por %p111, %p112
      %p115 = scmp.ne.s32.totalorder %s98, %s114
      %p116 = scmp.eq.s32.totalorder %s27, 0
      %p117 = por %p115, %p116
      %s118 = ssub.s32 %s28, %s40
      %s119 = ssub.s32 %s29, %s36
      %s120 = sor.u32 %s118, %s119
      %p121 = scmp.eq.s32.totalorder %s120, 0
      %s123 = sadd.s32 %s122, 1
      %s124 = scalar_select %p121, %s122, %s123
      %p127 = pneg %p121
      %p128 = scmp.eq.s32.totalorder %s21, 1
      %p129 = por %p127, %p128
      %p130 = scmp.ne.s32.totalorder %s122, %s125
      %p131 = scmp.eq.s32.totalorder %s21, 0
      %p132 = por %p130, %p131
      %p133 = scmp.ne.s32.totalorder %s122, %s125
      %p134 = scmp.eq.s32.totalorder %s26, 1
      %p135 = por %p133, %p134
      %p136 = scmp.ne.s32.totalorder %s125, %s126
      %p137 = scmp.eq.s32.totalorder %s26, 0
      %p138 = por %p136, %p137
      %p139 = scmp.ne.s32.totalorder %s125, %s126
      %p140 = scmp.eq.s32.totalorder %s27, 1
      %p141 = por %p139, %p140
      %p143 = scmp.ne.s32.totalorder %s126, %s142
      %p144 = scmp.eq.s32.totalorder %s27, 0
      %p145 = por %p143, %p144
      %s146 = ssub.s32 %s28, %s40
      %s147 = ssub.s32 %s29, %s36
      %s148 = sor.u32 %s146, %s147
      %p149 = scmp.eq.s32.totalorder %s148, 0
      %s151 = sadd.s32 %s150, 1
      %s152 = scalar_select %p149, %s150, %s151
      %p155 = pneg %p149
      %p156 = scmp.eq.s32.totalorder %s21, 1
      %p157 = por %p155, %p156
      %p158 = scmp.ne.s32.totalorder %s150, %s153
      %p159 = scmp.eq.s32.totalorder %s21, 0
      %p160 = por %p158, %p159
      %p161 = scmp.ne.s32.totalorder %s150, %s153
      %p162 = scmp.eq.s32.totalorder %s26, 1
      %p163 = por %p161, %p162
      %p164 = scmp.ne.s32.totalorder %s153, %s154
      %p165 = scmp.eq.s32.totalorder %s26, 0
      %p166 = por %p164, %p165
      %p167 = scmp.ne.s32.totalorder %s153, %s154
      %p168 = scmp.eq.s32.totalorder %s27, 1
      %p169 = por %p167, %p168
      %p171 = scmp.ne.s32.totalorder %s154, %s170
      %p172 = scmp.eq.s32.totalorder %s27, 0
      %p173 = por %p171, %p172
      %p174 = scmp.le.s32.totalorder 1, %s21
      %p175 = scmp.lt.s32.totalorder %s21, 3
      %p176 = pnand %p174, %p175
      %p177 = pneg %p176
      // Predicated region
      $region9: #{tpu_custom_call.1} parent=5 // pred_check
        _
      $region10: #{tpu_custom_call.1} parent=5 // pred_check_branch
        %179 = sbr.rel (%p176) target = $region12
      $region11: #{tpu_custom_call.1} parent=5 // pred_region
        %s180 = ssub.s32 %s21, 1
        // Predicated region
        $region13: #{tpu_custom_call.1} parent=11 // pred_check
          %p181 = pneg %p82
        $region14: #{tpu_custom_call.1} parent=11 // pred_check_branch
          %183 = sbr.rel (%p181) target = $region16
        $region15: #{tpu_custom_call.1} parent=11 // pred_region
          %s185 = ssub.s32 512, 512
          %186 = vsyncadd [#allocation6], %s185
          %s187 = sshll.u32 [#allocation5], 4
          %s188 = int_to_ptr.vmem [resolvable:$true] %s187
          %193 = dma.hbm_to_vmem [thread:$0]  %s1, 512, %s188, [#allocation6], 128, 128, 8
        $region16: #{tpu_custom_call.1} parent=11 // pred_fallthru
          _
      $region12: #{tpu_custom_call.1} parent=5 // pred_fallthru
        _
      %p194 = scmp.lt.s32.totalorder %s21, 2
      // Predicated region
      $region17: #{tpu_custom_call.1} parent=5 // pred_check
        %p195 = pneg %p194
      $region18: #{tpu_custom_call.1} parent=5 // pred_check_branch
        %197 = sbr.rel (%p195) target = $region20
      $region19: #{tpu_custom_call.1} parent=5 // pred_region
        // Predicated region
        $region21: #{tpu_custom_call.1} parent=19 // pred_check
          %p198 = pneg %p55
        $region22: #{tpu_custom_call.1} parent=19 // pred_check_branch
          %200 = sbr.rel (%p198) target = $region24
        $region23: #{tpu_custom_call.1} parent=19 // pred_region
          %s201 = sand.u32 %s45, 1
          %s202 = scalar_lea.sflag [#allocation3], %s201
          %s203 = sand.u32 %s45, 1
          %s204 = smul.addr %s203, 8
          %s205 = scalar_lea.vmem [#allocation2], %s204
          %s207 = ssub.s32 128, 128
          %208 = vsyncadd %s202, %s207
          %s209 = sadd.s32 %s29, %s28
          %s210 = smul.addr %s209, 128
          %s211 = scalar_lea.hbm %s0, %s210
          %s213 = sshll.u32 %s205, 4
          %s214 = int_to_ptr.vmem [resolvable:$true] %s213
          %216 = dma.hbm_to_vmem [thread:$0]  %s211, 128, %s214, %s202
        $region24: #{tpu_custom_call.1} parent=19 // pred_fallthru
          _
      $region20: #{tpu_custom_call.1} parent=5 // pred_fallthru
        _
      %p217 = scmp.le.s32.totalorder 1, %s21
      %p218 = scmp.lt.s32.totalorder %s21, 3
      %p219 = pnand %p217, %p218
      %p220 = pneg %p219
      // Predicated region
      $region25: #{tpu_custom_call.1} parent=5 // pred_check
        _
      $region26: #{tpu_custom_call.1} parent=5 // pred_check_branch
        %222 = sbr.rel (%p219) target = $region28
      $region27: #{tpu_custom_call.1} parent=5 // pred_region
        %s223 = ssub.s32 %s21, 1
        %s224 = sand.u32 %s48, 1
        %s225 = scalar_lea.sflag [#allocation3], %s224
        %s226 = sand.u32 %s48, 1
        %s227 = smul.addr %s226, 8
        %s228 = scalar_lea.vmem [#allocation2], %s227
        // Predicated region
        $region29: #{tpu_custom_call.1} parent=27 // pred_check
          %p229 = pneg %p61
        $region30: #{tpu_custom_call.1} parent=27 // pred_check_branch
          %231 = sbr.rel (%p229) target = $region32
        $region31: #{tpu_custom_call.1} parent=27 // pred_region
          %232 = dma.done %s225, 128
        $region32: #{tpu_custom_call.1} parent=27 // pred_fallthru
          _
        // Predicated region
        $region33: #{tpu_custom_call.1} parent=27 // pred_check
          %p233 = pneg %p82
        $region34: #{tpu_custom_call.1} parent=27 // pred_check_branch
          %235 = sbr.rel (%p233) target = $region36
        $region35: #{tpu_custom_call.1} parent=27 // pred_region
          %236 = dma.done [#allocation6], 512
        $region36: #{tpu_custom_call.1} parent=27 // pred_fallthru
          _
        %s237 = sand.u32 %s48, 1
        %s238 = scalar_lea.sflag [#allocation3], %s237
        %s239 = sand.u32 %s48, 1
        %s240 = smul.addr %s239, 8
        %s241 = scalar_lea.vmem [#allocation2], %s240
        %p242 = pneg %p61
        %p243 = pneg %p58
        %p244 = pneg %p82
        %p245 = pneg %p79
        %p246 = pneg %p110
        %p247 = pneg %p107
        %s248 = sand.u32 %s97, 1
        %s249 = scalar_lea.sflag [#allocation4], %s248
        %s250 = sand.u32 %s97, 1
        %s251 = smul.addr %s250, 8
        %s252 = scalar_lea.vmem [#allocation7], %s251
        %p253 = pneg %p138
        %p254 = pneg %p135
        %p255 = scmp.lt.s32.totalorder %s30, 1
        %s256 = scalar_select %p255, %s30, 1
        %p257 = scmp.lt.s32.totalorder %s31, 0
        %s258 = scalar_select %p257, %s31, 0
        %s259 = smul.addr %s256, 2
        %s260 = sadd.s32 %s258, %s259
        %s261 = smul.addr %s260, 8
        %s262 = scalar_lea.vmem %s3, %s261
        %p263 = pneg %p166
        %p264 = pneg %p163
        %s265 = sand.u32 %s153, 1
        %s266 = scalar_lea.sflag [#allocation9], %s265
        %s267 = sand.u32 %s153, 1
        %s268 = smul.addr %s267, 8
        %s269 = scalar_lea.vmem [#allocation8], %s268
        %p270 = scmp.lt.s32.totalorder %s30, 1
        %s271 = scalar_select %p270, %s30, 1
        %p272 = scmp.lt.s32.totalorder %s31, 0
        %s273 = scalar_select %p272, %s31, 0
        %s274 = smul.addr %s271, 2
        %s275 = sadd.s32 %s273, %s274
        %s276 = smul.addr %s275, 8
        %s277 = scalar_lea.vmem %s3, %s276
        %v278 = vld [vmem:[%s228] sm:$0xff]
        %v279 = vld [vmem:[#allocation5] sm:$0xff]
        %v280 = vld [vmem:[#allocation5 + $0x8] sm:$0xff]
        %v281 = vld [vmem:[#allocation5 + $0x10] sm:$0xff]
        %v282 = vld [vmem:[#allocation5 + $0x18] sm:$0xff]
        %vm283 = vcmask 261120
        %v285 = vsel %vm283, %v278, 0
        %287 = vmatprep.subr.mxu0 0.0
        %288 = vmatpush1.msra.mxu0 %v279
        %289 = vmatprep.subr.mxu0 0.0
        %290 = vmatpush1.msra.mxu0 %v280
        %291 = vmatprep.subr.mxu0 0.0
        %292 = vmatpush1.msra.mxu0 %v281
        %293 = vmatprep.subr.mxu0 0.0
        %294 = vmatpush1.msra.mxu0 %v282
        %295 = vmatprep.subr.mxu0 0.0
        %296 = vmatpush1.msra.mxu0 0.0
        %297 = vmatprep.subr.mxu0 0.0
        %298 = vmatpush1.msra.mxu0 0.0
        %299 = vmatprep.subr.mxu0 0.0
        %300 = vmatpush1.msra.mxu0 0.0
        %301 = vmatprep.subr.mxu0 0.0
        %302 = vmatpush1.msra.mxu0 0.0
        %303 = vmatprep.subr.mxu0 0.0
        %304 = vmatpush1.msra.mxu0 0.0
        %305 = vmatprep.subr.mxu0 0.0
        %306 = vmatpush1.msra.mxu0 0.0
        %307 = vmatprep.subr.mxu0 0.0
        %308 = vmatpush1.msra.mxu0 0.0
        %309 = vmatprep.subr.mxu0 0.0
        %310 = vmatpush1.msra.mxu0 0.0
        %311 = vmatprep.subr.mxu0 0.0
        %312 = vmatpush1.msra.mxu0 0.0
        %313 = vmatprep.subr.mxu0 0.0
        %314 = vmatpush1.msra.mxu0 0.0
        %315 = vmatprep.subr.mxu0 0.0
        %316 = vmatpush1.msra.mxu0 0.0
        %317 = vmatprep.subr.mxu0 0.0
        %318 = vmatpush1.msra.mxu0 0.0
        %319 = vmatprep.subr.mxu0 0.0
        %320 = vmatpush1.msra.mxu0 0.0
        %321 = vmatprep.subr.mxu0 0.0
        %322 = vmatpush1.msra.mxu0 0.0
        %323 = vmatprep.subr.mxu0 0.0
        %324 = vmatpush1.msra.mxu0 0.0
        %325 = vmatprep.subr.mxu0 0.0
        %326 = vmatpush1.msra.mxu0 0.0
        %327 = vmatprep.subr.mxu0 0.0
        %328 = vmatpush1.msra.mxu0 0.0
        %329 = vmatprep.subr.mxu0 0.0
        %330 = vmatpush1.msra.mxu0 0.0
        %331 = vmatprep.subr.mxu0 0.0
        %332 = vmatpush1.msra.mxu0 0.0
        %333 = vmatprep.subr.mxu0 0.0
        %334 = vmatpush1.msra.mxu0 0.0
        %335 = vmatprep.subr.mxu0 0.0
        %336 = vmatpush1.msra.mxu0 0.0
        %337 = vmatprep.subr.mxu0 0.0
        %338 = vmatpush1.msra.mxu0 0.0
        %339 = vmatprep.subr.mxu0 0.0
        %340 = vmatpush1.msra.mxu0 0.0
        %341 = vmatprep.subr.mxu0 0.0
        %342 = vmatpush1.msra.mxu0 0.0
        %343 = vmatprep.subr.mxu0 0.0
        %344 = vmatpush1.msra.mxu0 0.0
        %345 = vmatprep.subr.mxu0 0.0
        %346 = vmatpush1.msra.mxu0 0.0
        %347 = vmatprep.subr.mxu0 0.0
        %348 = vmatpush1.msra.mxu0 0.0
        %349 = vmatprep.subr.mxu0 0.0
        %350 = vmatpush1.msra.mxu0 0.0
        %351 = vmatprep.mubr.f32.mxu0 0.0
        %352 = vmatmul.mubr.f32.gmra.mrb[0].mxu0 %v285
        %v353 = vpop.f32.mrb[0].mxu0
        %v354 = vadd.f32 0.0, %v353
        %v355 = vpop.f32.mrb[0].mxu0
        %356 = vdwg.mxu0
        %v357 = vlaneseq
        %v358 = vshrl.u32 %v357, 7
        %s359 = smul.u32 %s31, 8
        %v360 = vstv %s359
        %v361 = vadd.s32 %v358, %v360
        %v362 = vcvt.s32.f32 %v361
        %v363 = vadd.f32 %v354, %v362
        %v364 = vmul.f32 %v363, 0.17677669
        %vm365 = vcmask 130048
        %366 = vst.msk [vmem:[%s252] sm:$0xff] %vm365, %v364
        %368 = vrot.lane.b32.xlu0 %v363, 112
        %v369 = vpop.permute.xlu0 %368
        %371 = vxpose.xlu0.b32.start [1/16] %v369, 128
        %372 = vxpose.xlu0.b32.cont [2/16] 0.0, 128
        %373 = vxpose.xlu0.b32.cont [3/16] 0.0, 128
        %374 = vxpose.xlu0.b32.cont [4/16] 0.0, 128
        %375 = vxpose.xlu0.b32.cont [5/16] 0.0, 128
        %376 = vxpose.xlu0.b32.cont [6/16] 0.0, 128
        %377 = vxpose.xlu0.b32.cont [7/16] 0.0, 128
        %378 = vxpose.xlu0.b32.cont [8/16] 0.0, 128
        %379 = vxpose.xlu0.b32.cont [9/16] 0.0, 128
        %380 = vxpose.xlu0.b32.cont [10/16] 0.0, 128
        %381 = vxpose.xlu0.b32.cont [11/16] 0.0, 128
        %382 = vxpose.xlu0.b32.cont [12/16] 0.0, 128
        %383 = vxpose.xlu0.b32.cont [13/16] 0.0, 128
        %384 = vxpose.xlu0.b32.cont [14/16] 0.0, 128
        %385 = vxpose.xlu0.b32.cont [15/16] 0.0, 128
        %386 = vxpose.xlu0.b32.end [16/16] 0.0, 128
        %v387 = vpop.trf.xlu0
        %v388 = vpop.trf.xlu0
        %v389 = vpop.trf.xlu0
        %v390 = vpop.trf.xlu0
        %v391 = vpop.trf.xlu0
        %v392 = vpop.trf.xlu0
        %v393 = vpop.trf.xlu0
        %v394 = vpop.trf.xlu0
        %v395 = vpop.trf.xlu0
        %v396 = vpop.trf.xlu0
        %v397 = vpop.trf.xlu0
        %v398 = vpop.trf.xlu0
        %v399 = vpop.trf.xlu0
        %v400 = vpop.trf.xlu0
        %v401 = vpop.trf.xlu0
        %v402 = vpop.trf.xlu0
        %vm403 = vcmask 64512
        %404 = vst.msk [vmem:[%s277] sm:$0xff] %vm403, %v387
        %405 = vst.msk [vmem:[%s277 + $0x8] sm:$0xff] %vm403, %v388
        %407 = vrot.lane.b32.xlu0 %v354, 96
        %v408 = vpop.permute.xlu0 %407
        %410 = vst.msk [vmem:[%s269] sm:$0xff] %vm365, %v408
        %s411 = sand.u32 %s97, 1
        %s412 = scalar_lea.sflag [#allocation4], %s411
        %s413 = sand.u32 %s97, 1
        %s414 = smul.addr %s413, 8
        %s415 = scalar_lea.vmem [#allocation7], %s414
        %p416 = scmp.lt.s32.totalorder %s30, 1
        %s417 = scalar_select %p416, %s30, 1
        %p418 = scmp.lt.s32.totalorder %s31, 0
        %s419 = scalar_select %p418, %s31, 0
        %s420 = smul.addr %s417, 2
        %s421 = sadd.s32 %s419, %s420
        %s422 = smul.addr %s421, 8
        %s423 = scalar_lea.vmem %s3, %s422
        %s424 = sand.u32 %s153, 1
        %s425 = scalar_lea.sflag [#allocation9], %s424
        %s426 = sand.u32 %s153, 1
        %s427 = smul.addr %s426, 8
        %s428 = scalar_lea.vmem [#allocation8], %s427
        // Predicated region
        $region37: #{tpu_custom_call.1} parent=27 // pred_check
          %p429 = pneg %p107
        $region38: #{tpu_custom_call.1} parent=27 // pred_check_branch
          %431 = sbr.rel (%p429) target = $region40
        $region39: #{tpu_custom_call.1} parent=27 // pred_region
          %s433 = ssub.s32 128, 128
          %434 = vsyncadd %s412, %s433
          %s435 = sadd.s32 %s31, %s30
          %s436 = smul.addr %s435, 128
          %s437 = scalar_lea.hbm %s2, %s436
          %s439 = sshll.u32 %s415, 4
          %s440 = int_to_ptr.vmem [resolvable:$true] %s439
          %442 = dma.vmem_to_hbm [thread:$0]  %s440, 128, %s437, %s412
        $region40: #{tpu_custom_call.1} parent=27 // pred_fallthru
          _
        // Predicated region
        $region41: #{tpu_custom_call.1} parent=27 // pred_check
          %p443 = pneg %p135
        $region42: #{tpu_custom_call.1} parent=27 // pred_check_branch
          %445 = sbr.rel (%p443) target = $region44
        $region43: #{tpu_custom_call.1} parent=27 // pred_region
          _
        $region44: #{tpu_custom_call.1} parent=27 // pred_fallthru
          _
        // Predicated region
        $region45: #{tpu_custom_call.1} parent=27 // pred_check
          %p446 = pneg %p163
        $region46: #{tpu_custom_call.1} parent=27 // pred_check_branch
          %448 = sbr.rel (%p446) target = $region48
        $region47: #{tpu_custom_call.1} parent=27 // pred_region
          %s450 = ssub.s32 128, 128
          %451 = vsyncadd %s425, %s450
          %s452 = sadd.s32 %s31, %s30
          %s453 = smul.addr %s452, 128
          %s454 = scalar_lea.hbm %s4, %s453
          %s456 = sshll.u32 %s428, 4
          %s457 = int_to_ptr.vmem [resolvable:$true] %s456
          %459 = dma.vmem_to_hbm [thread:$0]  %s457, 128, %s454, %s425
        $region48: #{tpu_custom_call.1} parent=27 // pred_fallthru
          _
      $region28: #{tpu_custom_call.1} parent=5 // pred_fallthru
        _
      %p460 = scmp.le.s32.totalorder 2, %s21
      // Predicated region
      $region49: #{tpu_custom_call.1} parent=5 // pred_check
        %p461 = pneg %p460
      $region50: #{tpu_custom_call.1} parent=5 // pred_check_branch
        %463 = sbr.rel (%p461) target = $region52
      $region51: #{tpu_custom_call.1} parent=5 // pred_region
        %s464 = ssub.s32 %s21, 2
        // Predicated region
        $region53: #{tpu_custom_call.1} parent=51 // pred_check
          %p465 = pneg %p113
        $region54: #{tpu_custom_call.1} parent=51 // pred_check_branch
          %467 = sbr.rel (%p465) target = $region56
        $region55: #{tpu_custom_call.1} parent=51 // pred_region
          %s468 = sand.u32 %s98, 1
          %s469 = scalar_lea.sflag [#allocation4], %s468
          %s470 = sand.u32 %s98, 1
          %s471 = smul.addr %s470, 8
          %s472 = scalar_lea.vmem [#allocation7], %s471
          %473 = dma.done %s469, 128
        $region56: #{tpu_custom_call.1} parent=51 // pred_fallthru
          _
        // Predicated region
        $region57: #{tpu_custom_call.1} parent=51 // pred_check
          %p474 = pneg %p141
        $region58: #{tpu_custom_call.1} parent=51 // pred_check_branch
          %476 = sbr.rel (%p474) target = $region60
        $region59: #{tpu_custom_call.1} parent=51 // pred_region
          %p477 = scmp.lt.s32.totalorder %s32, 1
          %s478 = scalar_select %p477, %s32, 1
          %p479 = scmp.lt.s32.totalorder %s33, 0
          %s480 = scalar_select %p479, %s33, 0
          %s481 = smul.addr %s478, 2
          %s482 = sadd.s32 %s480, %s481
          %s483 = smul.addr %s482, 8
          %s484 = scalar_lea.vmem %s3, %s483
        $region60: #{tpu_custom_call.1} parent=51 // pred_fallthru
          _
        // Predicated region
        $region61: #{tpu_custom_call.1} parent=51 // pred_check
          %p485 = pneg %p169
        $region62: #{tpu_custom_call.1} parent=51 // pred_check_branch
          %487 = sbr.rel (%p485) target = $region64
        $region63: #{tpu_custom_call.1} parent=51 // pred_region
          %s488 = sand.u32 %s154, 1
          %s489 = scalar_lea.sflag [#allocation9], %s488
          %s490 = sand.u32 %s154, 1
          %s491 = smul.addr %s490, 8
          %s492 = scalar_lea.vmem [#allocation8], %s491
          %493 = dma.done %s489, 128
        $region64: #{tpu_custom_call.1} parent=51 // pred_fallthru
          _
      $region52: #{tpu_custom_call.1} parent=5 // pred_fallthru
        _
    $region6: #{tpu_custom_call.1} parent=1 // loop_footer
      %s25 = sadd.s32 1, %s21
    $region7: #{tpu_custom_call.1} parent=1 // loop_footer_branch
      %20 = sbr.rel target = $region3
    $region8: #{tpu_custom_call.1} parent=1 // loop_exit
      _
    %494 = vsyncpa [#allocation3], 1
    %s495 = scalar_lea.sflag [#allocation3], 1
    %496 = vsyncpa %s495, 1
    %497 = vsyncpa [#allocation6], 1
    %498 = vsyncpa [#allocation4], 1
    %s499 = scalar_lea.sflag [#allocation4], 1
    %500 = vsyncpa %s499, 1
    %501 = vsyncpa [#allocation9], 1
    %s502 = scalar_lea.sflag [#allocation9], 1
    %503 = vsyncpa %s502, 1

</llo_original>
